<compile_context>
chip_gen: v6e
topology: v6e:2x2x1
jax: 0.10.0
libtpu: 0.0.40
codegen_flags: <defaults>
</compile_context>

<pallas_src>
import jax
import jax.numpy as jnp
from jax.experimental import pallas as pl
from jax.experimental.pallas import tpu as pltpu


_TILE_BYTES = 4 * 1024 * 1024      # ~4 MiB per block, dtype-independent byte budget
_VMEM_LIMIT = 48 * 1024 * 1024     # fits v5e/v6e (128 MiB) and leaves headroom on v7x (64 MiB)


def _round_up(n: int, m: int) -> int:
    return ((n + m - 1) // m) * m


def _scale_kernel(scale_ref, x_ref, o_ref):
    # scale lives in SMEM as one f32 scalar; multiply in f32 then cast the
    # product to the output dtype (PyTorch promote-then-round numerics).
    s = scale_ref[0]
    o_ref[...] = (x_ref[...].astype(jnp.float32) * s).astype(o_ref.dtype)


def scale_forward(x: jnp.ndarray, scale: jnp.ndarray) -> jnp.ndarray:
    """Return x * scale (learnable scalar). Same shape/dtype as x."""
    orig_shape = x.shape
    dtype = x.dtype
    total = x.size
    if total == 0:
        return x
    itemsize = jnp.dtype(dtype).itemsize

    # Pick a column width that (a) divides total exactly -> no pad and no
    # final slice (each of those was a full extra HBM pass), and (b) is a
    # multiple of 128 whenever possible so stores are unmasked full-lane vst.
    cols = None
    for c in (1024, 512, 256, 128):
        if total % c == 0:
            cols = c
            break
    if cols is None:
        # Lane-sparse fallback: natural trailing dim (block == full array dim
        # is always legal).  Stores may be lane-masked, but we still avoid the
        # extra pad/slice HBM passes.
        # TODO(synk): shapes with a huge, non-128-divisible trailing dim would
        # need column tiling here; not expected for this regression-head op.
        cols = orig_shape[-1] if x.ndim >= 2 else total

    n_rows = total // cols
    x2d = x.reshape(n_rows, cols)          # contiguous reshape: no data movement

    # Sublane multiple for the block's second-to-last dim (8/16/32 for 4/2/1 B).
    sublane = max(8, 32 // itemsize)

    if n_rows <= sublane:
        # Single tiny block equal to the full array: always a legal layout.
        tile_rows = n_rows
    else:
        # dtype-aware tile: ~_TILE_BYTES per block, in whole sublane groups.
        row_bytes = cols * itemsize
        tile_rows = max(sublane, (_TILE_BYTES // row_bytes) // sublane * sublane)
        # Cap so the grid has >= 2 steps and both v7x TensorCores get work.
        tile_rows = min(tile_rows, _round_up(pl.cdiv(n_rows, 2), sublane))

    grid = pl.cdiv(n_rows, tile_rows)

    scale_smem = jnp.asarray(scale, dtype=jnp.float32).reshape(1)

    out2d = pl.pallas_call(
        _scale_kernel,
        out_shape=jax.ShapeDtypeStruct((n_rows, cols), dtype),
        grid=(grid,),
        in_specs=[
            # learnable scalar in SMEM, same value for every grid step
            pl.BlockSpec(memory_space=pltpu.MemorySpace.SMEM),
            # big row-tiled block; last dim is either a multiple of 128 or the
            # full array dim, second-to-last is a sublane multiple or the full
            # dim, so the (8,128)/(16,128)/(32,128) constraint always holds.
            pl.BlockSpec((tile_rows, cols), lambda i: (i, 0)),
        ],
        out_specs=pl.BlockSpec((tile_rows, cols), lambda i: (i, 0)),
        compiler_params=pltpu.CompilerParams(
            dimension_semantics=("parallel",),
            vmem_limit_bytes=_VMEM_LIMIT,
        ),
        cost_estimate=pl.CostEstimate(
            flops=total,
            transcendentals=0,
            bytes_accessed=2 * total * itemsize,
        ),
    )(scale_smem, x2d)

    return out2d.reshape(orig_shape)


if __name__ == "__main__":
    key = jax.random.PRNGKey(0)
    k_x, k_x2, k_x3 = jax.random.split(key, 3)

    # Module __init__: nn.Parameter(torch.tensor(init_value)); use a non-trivial
    # init so the multiply is visible in the check.
    init_value = 0.5
    scale_param = jnp.array(init_value, dtype=jnp.float32)

    # Small (B, C, T) features as used by the regression head (lane-dense path).
    x = jax.random.normal(k_x, (2, 4, 16), dtype=jnp.float32)
    out = jax.block_until_ready(scale_forward(x, scale_param))
    ref = x * scale_param
    assert out.shape == x.shape and out.dtype == x.dtype
    assert jnp.allclose(out, ref, atol=1e-6), "mismatch vs reference (f32 small)"

    # Non-lane-aligned shape: exercises the natural-trailing-dim fallback path
    # (no pad / no slice, masked ragged last row-block).
    x2 = jax.random.normal(k_x2, (3, 5, 300), dtype=jnp.float32)
    out2 = jax.block_until_ready(scale_forward(x2, scale_param))
    ref2 = x2 * scale_param
    assert out2.shape == x2.shape and out2.dtype == x2.dtype
    assert jnp.allclose(out2, ref2, atol=1e-6), "mismatch vs reference (fallback)"

    # bf16 input: multiply in f32, round once at the end (PyTorch parity).
    x3 = jax.random.normal(k_x3, (2, 8, 64), dtype=jnp.bfloat16)
    out3 = jax.block_until_ready(scale_forward(x3, scale_param))
    ref3 = (x3.astype(jnp.float32) * scale_param).astype(jnp.bfloat16)
    assert out3.shape == x3.shape and out3.dtype == x3.dtype
    assert jnp.allclose(out3.astype(jnp.float32), ref3.astype(jnp.float32)), \
        "mismatch vs reference (bf16)"

    print("KERNEL_OK")
</pallas_src>

<mosaic_0001>
module attributes {stable_mosaic.version = 11 : i64} {
  func.func @_scale_kernel(%arg0: i32, %arg1: memref<1xf32, #tpu.memory_space<smem>>, %arg2: memref<1x128xf32, #tpu.memory_space<vmem>>, %arg3: memref<1x128xf32, #tpu.memory_space<vmem>>) attributes {dimension_semantics = [#tpu.dimension_semantics<parallel>], iteration_bounds = array<i64: 1>, scalar_prefetch = 0 : i64, scratch_operands = 0 : i64, tpu.core_type = #tpu.core_type<tc>, window_params = [{transform_indices = @transform_0, window_bounds = array<i64: 1>}, {transform_indices = @transform_1, window_bounds = array<i64: 1, 128>}, {transform_indices = @transform_2, window_bounds = array<i64: 1, 128>}]} {
    %c0 = arith.constant 0 : index
    %0 = memref.load %arg1[%c0] : memref<1xf32, #tpu.memory_space<smem>>
    %c0_0 = arith.constant 0 : index
    %c0_1 = arith.constant 0 : index
    %1 = vector.load %arg2[%c0_0, %c0_1] : memref<1x128xf32, #tpu.memory_space<vmem>>, vector<1x128xf32>
    %2 = vector.broadcast %0 : f32 to vector<1x128xf32>
    %3 = arith.mulf %1, %2 : vector<1x128xf32>
    %c0_2 = arith.constant 0 : index
    %c0_3 = arith.constant 0 : index
    %4 = vector.load %arg3[%c0_2, %c0_3] : memref<1x128xf32, #tpu.memory_space<vmem>>, vector<1x128xf32>
    tpu.vector_store %arg3[%c0_2, %c0_3], %3 {strides = array<i32>} : memref<1x128xf32, #tpu.memory_space<vmem>>, vector<1x128xf32>,
    return
  }
  func.func @transform_0(%arg0: i32) -> i32 {
    %c0_i32 = arith.constant 0 : i32
    %c0_i32_0 = arith.constant 0 : i32
    return %c0_i32 : i32
  }
  func.func @transform_1(%arg0: i32) -> (i32, i32) {
    %c0_i32 = arith.constant 0 : i32
    %c0_i32_0 = arith.constant 0 : i32
    return %arg0, %c0_i32 : i32, i32
  }
  func.func @transform_2(%arg0: i32) -> (i32, i32) {
    %c0_i32 = arith.constant 0 : i32
    %c0_i32_0 = arith.constant 0 : i32
    return %arg0, %c0_i32 : i32, i32
  }
}

</mosaic_0001>

<llo_original>
// kernel: tpu_custom_call.1
$region0: #{tpu_custom_call.1}
  #allocation0 [shape = 'u32[]', space=smem, size = 0x4, offset = 0x4, fixed_abs, tag = 'smem constant byte address 0x4 - core index']
  #allocation1 [shape = 'u32[144,128]{1,0:T(1,128)}', space=vmem, size = 0x12000, scoped, tag = 'internal scratch']
  #allocation2 [shape = 'f32[1]{0:T(128)S(6)}', space=smem, size = 0x200, scoped, tag = 'scoped memory for tpu_custom_call.1']
  %s0 = inlined_call_operand.<no memory space> [shape: f32[1], index: 0, kind: input, shape index: {}]
  %s1 = inlined_call_operand.vmem [shape: f32[1,128], index: 1, kind: input, shape index: {}]
  %s2 = inlined_call_operand.hbm [shape: f32[1,128], index: 2, kind: output, shape index: {}]
  %s3 = sld [smem:[#allocation0]]
  $region18: #{tpu_custom_call.1} parent=0
    _
  %s5 = ssub.s32 1, %s3
  %s6 = scalar_select 0, %s5, %s3
  %7 = sst [smem:[#allocation2]] %s0
  $region1: #{tpu_custom_call.1} parent=0
    #allocation3 [shape = 'u8[512]{0}', space=vmem, size = 0x400, scoped, tag = 'output window, operand 0, single buffered']
    #allocation4 [shape = 's32[1]{0}', space=sflag, size = 0x4, scoped, tag = 'scoped memory for tpu_custom_call.1']
    %8 = vsyncpa [#allocation4], 0
    // Predicated region
    $region2: #{tpu_custom_call.1} parent=1 // pred_check
      _
    $region3: #{tpu_custom_call.1} parent=1 // pred_check_branch
      %10 = sbr.rel (0) target = $region5
    $region4: #{tpu_custom_call.1} parent=1 // pred_region
      _
    $region5: #{tpu_custom_call.1} parent=1 // pred_fallthru
      _
    // Predicated region
    $region6: #{tpu_custom_call.1} parent=1 // pred_check
      _
    $region7: #{tpu_custom_call.1} parent=1 // pred_check_branch
      %12 = sbr.rel (0) target = $region9
    $region8: #{tpu_custom_call.1} parent=1 // pred_region
      _
    $region9: #{tpu_custom_call.1} parent=1 // pred_fallthru
      _
    %s13 = sld [smem:[#allocation2]]
    %v14 = vld [vmem:[%s1] sm:$0x1]
    %v15 = vstv %s13
    %v16 = vmul.f32 %v14, %v15
    %17 = vst [vmem:[#allocation3] sm:$0x1] %v16
    // Predicated region
    $region10: #{tpu_custom_call.1} parent=1 // pred_check
      _
    $region11: #{tpu_custom_call.1} parent=1 // pred_check_branch
      %19 = sbr.rel (0) target = $region13
    $region12: #{tpu_custom_call.1} parent=1 // pred_region
      %s21 = ssub.s32 16, 16
      %22 = vsyncadd [#allocation4], %s21
      %s24 = sshll.u32 [#allocation3], 4
      %s25 = int_to_ptr.vmem [resolvable:$true] %s24
      %27 = dma.vmem_to_hbm [thread:$0]  %s25, 16, %s2, [#allocation4]
    $region13: #{tpu_custom_call.1} parent=1 // pred_fallthru
      _
    // Predicated region
    $region14: #{tpu_custom_call.1} parent=1 // pred_check
      _
    $region15: #{tpu_custom_call.1} parent=1 // pred_check_branch
      %29 = sbr.rel (0) target = $region17
    $region16: #{tpu_custom_call.1} parent=1 // pred_region
      %30 = dma.done [#allocation4], 16
    $region17: #{tpu_custom_call.1} parent=1 // pred_fallthru
      _
    %31 = vsyncpa [#allocation4], 1

</llo_original>
